<compile_context>
chip_gen: v6e
topology: v6e:2x2x1
jax: 0.10.0
libtpu: 0.0.40
codegen_flags: <defaults>
</compile_context>

<pallas_src>
import jax
import jax.numpy as jnp
from jax.experimental import pallas as pl
from jax.experimental.pallas import tpu as pltpu

HIDDEN = 128


def _round_up(n, m):
    return ((n + m - 1) // m) * m


def ae_kernel(x_ref,
              w1_ref, b1_ref,
              w2_ref, b2_ref,
              w3_ref, b3_ref,
              w4_ref, b4_ref,
              out_ref):
    """Fused 4 x (matmul + bias + ReLU) on one (tb, D) batch tile.

    x arrives f32 and is cast to bf16 here (in vregs, no extra HBM traffic);
    MXU accumulates in f32; bias+ReLU epilogue in f32; intermediates are
    re-cast to bf16 only to feed the next matmul; the store is bf16.
    """
    h = x_ref[...].astype(jnp.bfloat16)   # in-kernel cast: one HBM pass for x

    def layer(h_bf16, w_ref, b_ref):
        acc = jnp.dot(h_bf16, w_ref[...], preferred_element_type=jnp.float32)
        # Fused bias + ReLU in f32 (bias broadcasts (1, out) -> (tb, out)).
        return jnp.maximum(acc + b_ref[...], 0.0)

    h = layer(h, w1_ref, b1_ref)                        # encoder hidden
    h = layer(h.astype(jnp.bfloat16), w2_ref, b2_ref)   # encoder output
    h = layer(h.astype(jnp.bfloat16), w3_ref, b3_ref)   # decoder hidden
    h = layer(h.astype(jnp.bfloat16), w4_ref, b4_ref)   # decoder output
    out_ref[...] = h.astype(out_ref.dtype)              # bf16 store


def ae_forward(x, params, *, tile_b=1024, out_dtype=jnp.bfloat16):
    """x: (B, D) float32. params: dict of (in,out) weights and (1,out) biases.

    Returns bf16 by default (cast downstream only if the consumer needs f32).
    """
    B, D = x.shape

    # Weights bf16 (MXU path), biases f32 (epilogue). Tiny, fetched once.
    w = [params[f"w{i}"].astype(jnp.bfloat16) for i in range(1, 5)]
    b = [params[f"b{i}"].astype(jnp.float32) for i in range(1, 5)]

    # Batch tile selection:
    #  * multiple of 16 (bf16 output sublane granule), validated here,
    #  * >= 2 grid steps whenever B allows (keeps both v7x TCs busy),
    #  * capped at tile_b (default 1024; DMA-bound beyond ~1 MiB per step),
    #  * if one tile covers the whole batch, use the exact (B, D) block so
    #    there is no padding at all.
    tile_b = _round_up(max(int(tile_b), 16), 16)
    tb = min(tile_b, max(16, _round_up(pl.cdiv(B, 2), 16)))
    if tb >= B:
        tb = B                      # single block == full array dims
    grid = (pl.cdiv(B, tb),)
    # Ragged tail (B % tb != 0): handled by Pallas' boundary-block masking —
    # out-of-bounds stores of the last tile are discarded, and each output row
    # depends only on its own input row, so nothing leaks.  No jnp.pad copy.

    # Constant index_map -> weights/biases stay VMEM-resident across the grid.
    full = lambda arr: pl.BlockSpec(arr.shape, lambda i: (0,) * arr.ndim)

    out = pl.pallas_call(
        ae_kernel,
        out_shape=jax.ShapeDtypeStruct((B, D), out_dtype),
        grid_spec=pltpu.PrefetchScalarGridSpec(
            num_scalar_prefetch=0,
            grid=grid,
            in_specs=[
                pl.BlockSpec((tb, D), lambda i: (i, 0)),   # streamed f32 x tile
                full(w[0]), full(b[0]),
                full(w[1]), full(b[1]),
                full(w[2]), full(b[2]),
                full(w[3]), full(b[3]),
            ],
            out_specs=pl.BlockSpec((tb, D), lambda i: (i, 0)),
        ),
        compiler_params=pltpu.CompilerParams(
            dimension_semantics=("parallel",)),   # batch axis shards across TCs on v7x
    )(x, w[0], b[0], w[1], b[1], w[2], b[2], w[3], b[3])

    return out


def init_params(key, input_shape):
    """PyTorch-style uniform(-1/sqrt(fan_in), 1/sqrt(fan_in)) init.
    Weights returned already transposed to (in_features, out_features)."""
    dims = [(input_shape, HIDDEN), (HIDDEN, HIDDEN),
            (HIDDEN, HIDDEN), (HIDDEN, input_shape)]
    params = {}
    for idx, (fan_in, fan_out) in enumerate(dims, start=1):
        key, kw, kb = jax.random.split(key, 3)
        bound = 1.0 / jnp.sqrt(fan_in)
        params[f"w{idx}"] = jax.random.uniform(
            kw, (fan_in, fan_out), jnp.float32, -bound, bound)
        params[f"b{idx}"] = jax.random.uniform(
            kb, (1, fan_out), jnp.float32, -bound, bound)
    return params


def ae_reference(x, p):
    """Pure-JAX reference mirroring the kernel's bf16/f32 mixed numerics."""
    def layer(h, w, bias):
        acc = jnp.dot(h.astype(jnp.bfloat16), w.astype(jnp.bfloat16),
                      preferred_element_type=jnp.float32)
        return jnp.maximum(acc + bias.astype(jnp.float32), 0.0)

    h = layer(x, p["w1"], p["b1"])
    h = layer(h, p["w2"], p["b2"])
    h = layer(h, p["w3"], p["b3"])
    h = layer(h, p["w4"], p["b4"])
    return h.astype(jnp.bfloat16)


def _check(x, params):
    out = jax.block_until_ready(ae_forward(x, params))
    ref = ae_reference(x, params)
    assert out.shape == x.shape, (out.shape, x.shape)
    assert out.dtype == jnp.bfloat16
    assert jnp.allclose(out.astype(jnp.float32), ref.astype(jnp.float32),
                        atol=2e-2, rtol=2e-2), "mismatch vs reference"


if __name__ == "__main__":
    INPUT_SHAPE = 256   # flattened feature dim (lane-dense, multiple of 128)
    BATCH = 8           # small demo batch -> single full-array block, no padding

    key = jax.random.PRNGKey(0)
    kp, kx, kx2 = jax.random.split(key, 3)
    params = init_params(kp, INPUT_SHAPE)

    # Single-tile path (block == full array dims).
    x = jax.random.normal(kx, (BATCH, INPUT_SHAPE), jnp.float32)
    _check(x, params)

    # Multi-step + ragged-tail path (grid=2, last tile partially valid).
    x2 = jax.random.normal(kx2, (40, INPUT_SHAPE), jnp.float32)
    _check(x2, params)

    print("KERNEL_OK")
</pallas_src>

<mosaic_0001>
module attributes {stable_mosaic.version = 11 : i64} {
  func.func @ae_kernel(%arg0: i32, %arg1: memref<8x256xf32, #tpu.memory_space<vmem>>, %arg2: memref<256x128xbf16, #tpu.memory_space<vmem>>, %arg3: memref<1x128xf32, #tpu.memory_space<vmem>>, %arg4: memref<128x128xbf16, #tpu.memory_space<vmem>>, %arg5: memref<1x128xf32, #tpu.memory_space<vmem>>, %arg6: memref<128x128xbf16, #tpu.memory_space<vmem>>, %arg7: memref<1x128xf32, #tpu.memory_space<vmem>>, %arg8: memref<128x256xbf16, #tpu.memory_space<vmem>>, %arg9: memref<1x256xf32, #tpu.memory_space<vmem>>, %arg10: memref<8x256xbf16, #tpu.memory_space<vmem>>) attributes {dimension_semantics = [#tpu.dimension_semantics<parallel>], iteration_bounds = array<i64: 1>, scalar_prefetch = 0 : i64, scratch_operands = 0 : i64, tpu.core_type = #tpu.core_type<tc>, window_params = [{transform_indices = @transform_0, window_bounds = array<i64: 8, 256>}, {pipeline_mode = #tpu.pipeline_mode<synchronous>, transform_indices = @transform_1, window_bounds = array<i64: 256, 128>}, {pipeline_mode = #tpu.pipeline_mode<synchronous>, transform_indices = @transform_2, window_bounds = array<i64: 1, 128>}, {pipeline_mode = #tpu.pipeline_mode<synchronous>, transform_indices = @transform_3, window_bounds = array<i64: 128, 128>}, {pipeline_mode = #tpu.pipeline_mode<synchronous>, transform_indices = @transform_4, window_bounds = array<i64: 1, 128>}, {pipeline_mode = #tpu.pipeline_mode<synchronous>, transform_indices = @transform_5, window_bounds = array<i64: 128, 128>}, {pipeline_mode = #tpu.pipeline_mode<synchronous>, transform_indices = @transform_6, window_bounds = array<i64: 1, 128>}, {pipeline_mode = #tpu.pipeline_mode<synchronous>, transform_indices = @transform_7, window_bounds = array<i64: 128, 256>}, {pipeline_mode = #tpu.pipeline_mode<synchronous>, transform_indices = @transform_8, window_bounds = array<i64: 1, 256>}, {transform_indices = @transform_9, window_bounds = array<i64: 8, 256>}]} {
    %c0 = arith.constant 0 : index
    %c0_0 = arith.constant 0 : index
    %0 = vector.load %arg1[%c0, %c0_0] : memref<8x256xf32, #tpu.memory_space<vmem>>, vector<8x256xf32>
    %1 = arith.truncf %0 : vector<8x256xf32> to vector<8x256xbf16>
    %c0_1 = arith.constant 0 : index
    %c0_2 = arith.constant 0 : index
    %2 = vector.load %arg2[%c0_1, %c0_2] : memref<256x128xbf16, #tpu.memory_space<vmem>>, vector<256x128xbf16>
    %cst = arith.constant dense<0.000000e+00> : vector<8x128xf32>
    %3 = tpu.matmul %1, %2, %cst {dimension_numbers = #tpu.dot_dimension_numbers<[1], [0], [0], [1], [0, 0, 1, 1], [], []>} : vector<8x256xbf16>, vector<256x128xbf16>, vector<8x128xf32> -> vector<8x128xf32>
    %c0_3 = arith.constant 0 : index
    %c0_4 = arith.constant 0 : index
    %4 = vector.load %arg3[%c0_3, %c0_4] : memref<1x128xf32, #tpu.memory_space<vmem>>, vector<1x128xf32>
    %5 = vector.broadcast %4 : vector<1x128xf32> to vector<8x128xf32>
    %6 = arith.addf %3, %5 : vector<8x128xf32>
    %cst_5 = arith.constant 0.000000e+00 : f32
    %7 = vector.broadcast %cst_5 : f32 to vector<8x128xf32>
    %8 = arith.maximumf %6, %7 : vector<8x128xf32>
    %9 = arith.truncf %8 : vector<8x128xf32> to vector<8x128xbf16>
    %c0_6 = arith.constant 0 : index
    %c0_7 = arith.constant 0 : index
    %10 = vector.load %arg4[%c0_6, %c0_7] : memref<128x128xbf16, #tpu.memory_space<vmem>>, vector<128x128xbf16>
    %cst_8 = arith.constant dense<0.000000e+00> : vector<8x128xf32>
    %11 = tpu.matmul %9, %10, %cst_8 {dimension_numbers = #tpu.dot_dimension_numbers<[1], [0], [0], [1], [0, 0, 1, 1], [], []>} : vector<8x128xbf16>, vector<128x128xbf16>, vector<8x128xf32> -> vector<8x128xf32>
    %c0_9 = arith.constant 0 : index
    %c0_10 = arith.constant 0 : index
    %12 = vector.load %arg5[%c0_9, %c0_10] : memref<1x128xf32, #tpu.memory_space<vmem>>, vector<1x128xf32>
    %13 = vector.broadcast %12 : vector<1x128xf32> to vector<8x128xf32>
    %14 = arith.addf %11, %13 : vector<8x128xf32>
    %cst_11 = arith.constant 0.000000e+00 : f32
    %15 = vector.broadcast %cst_11 : f32 to vector<8x128xf32>
    %16 = arith.maximumf %14, %15 : vector<8x128xf32>
    %17 = arith.truncf %16 : vector<8x128xf32> to vector<8x128xbf16>
    %c0_12 = arith.constant 0 : index
    %c0_13 = arith.constant 0 : index
    %18 = vector.load %arg6[%c0_12, %c0_13] : memref<128x128xbf16, #tpu.memory_space<vmem>>, vector<128x128xbf16>
    %cst_14 = arith.constant dense<0.000000e+00> : vector<8x128xf32>
    %19 = tpu.matmul %17, %18, %cst_14 {dimension_numbers = #tpu.dot_dimension_numbers<[1], [0], [0], [1], [0, 0, 1, 1], [], []>} : vector<8x128xbf16>, vector<128x128xbf16>, vector<8x128xf32> -> vector<8x128xf32>
    %c0_15 = arith.constant 0 : index
    %c0_16 = arith.constant 0 : index
    %20 = vector.load %arg7[%c0_15, %c0_16] : memref<1x128xf32, #tpu.memory_space<vmem>>, vector<1x128xf32>
    %21 = vector.broadcast %20 : vector<1x128xf32> to vector<8x128xf32>
    %22 = arith.addf %19, %21 : vector<8x128xf32>
    %cst_17 = arith.constant 0.000000e+00 : f32
    %23 = vector.broadcast %cst_17 : f32 to vector<8x128xf32>
    %24 = arith.maximumf %22, %23 : vector<8x128xf32>
    %25 = arith.truncf %24 : vector<8x128xf32> to vector<8x128xbf16>
    %c0_18 = arith.constant 0 : index
    %c0_19 = arith.constant 0 : index
    %26 = vector.load %arg8[%c0_18, %c0_19] : memref<128x256xbf16, #tpu.memory_space<vmem>>, vector<128x256xbf16>
    %cst_20 = arith.constant dense<0.000000e+00> : vector<8x256xf32>
    %27 = tpu.matmul %25, %26, %cst_20 {dimension_numbers = #tpu.dot_dimension_numbers<[1], [0], [0], [1], [0, 0, 1, 1], [], []>} : vector<8x128xbf16>, vector<128x256xbf16>, vector<8x256xf32> -> vector<8x256xf32>
    %c0_21 = arith.constant 0 : index
    %c0_22 = arith.constant 0 : index
    %28 = vector.load %arg9[%c0_21, %c0_22] : memref<1x256xf32, #tpu.memory_space<vmem>>, vector<1x256xf32>
    %29 = vector.broadcast %28 : vector<1x256xf32> to vector<8x256xf32>
    %30 = arith.addf %27, %29 : vector<8x256xf32>
    %cst_23 = arith.constant 0.000000e+00 : f32
    %31 = vector.broadcast %cst_23 : f32 to vector<8x256xf32>
    %32 = arith.maximumf %30, %31 : vector<8x256xf32>
    %33 = arith.truncf %32 : vector<8x256xf32> to vector<8x256xbf16>
    %c0_24 = arith.constant 0 : index
    %c0_25 = arith.constant 0 : index
    %34 = vector.load %arg10[%c0_24, %c0_25] : memref<8x256xbf16, #tpu.memory_space<vmem>>, vector<8x256xbf16>
    tpu.vector_store %arg10[%c0_24, %c0_25], %33 {strides = array<i32>} : memref<8x256xbf16, #tpu.memory_space<vmem>>, vector<8x256xbf16>,
    return
  }
  func.func @transform_0(%arg0: i32) -> (i32, i32) {
    %c0_i32 = arith.constant 0 : i32
    %c0_i32_0 = arith.constant 0 : i32
    return %arg0, %c0_i32 : i32, i32
  }
  func.func @transform_1(%arg0: i32) -> (i32, i32) {
    %c0_i32 = arith.constant 0 : i32
    %c0_i32_0 = arith.constant 0 : i32
    %c0_i32_1 = arith.constant 0 : i32
    return %c0_i32, %c0_i32_0 : i32, i32
  }
  func.func @transform_2(%arg0: i32) -> (i32, i32) {
    %c0_i32 = arith.constant 0 : i32
    %c0_i32_0 = arith.constant 0 : i32
    %c0_i32_1 = arith.constant 0 : i32
    return %c0_i32, %c0_i32_0 : i32, i32
  }
  func.func @transform_3(%arg0: i32) -> (i32, i32) {
    %c0_i32 = arith.constant 0 : i32
    %c0_i32_0 = arith.constant 0 : i32
    %c0_i32_1 = arith.constant 0 : i32
    return %c0_i32, %c0_i32_0 : i32, i32
  }
  func.func @transform_4(%arg0: i32) -> (i32, i32) {
    %c0_i32 = arith.constant 0 : i32
    %c0_i32_0 = arith.constant 0 : i32
    %c0_i32_1 = arith.constant 0 : i32
    return %c0_i32, %c0_i32_0 : i32, i32
  }
  func.func @transform_5(%arg0: i32) -> (i32, i32) {
    %c0_i32 = arith.constant 0 : i32
    %c0_i32_0 = arith.constant 0 : i32
    %c0_i32_1 = arith.constant 0 : i32
    return %c0_i32, %c0_i32_0 : i32, i32
  }
  func.func @transform_6(%arg0: i32) -> (i32, i32) {
    %c0_i32 = arith.constant 0 : i32
    %c0_i32_0 = arith.constant 0 : i32
    %c0_i32_1 = arith.constant 0 : i32
    return %c0_i32, %c0_i32_0 : i32, i32
  }
  func.func @transform_7(%arg0: i32) -> (i32, i32) {
    %c0_i32 = arith.constant 0 : i32
    %c0_i32_0 = arith.constant 0 : i32
    %c0_i32_1 = arith.constant 0 : i32
    return %c0_i32, %c0_i32_0 : i32, i32
  }
  func.func @transform_8(%arg0: i32) -> (i32, i32) {
    %c0_i32 = arith.constant 0 : i32
    %c0_i32_0 = arith.constant 0 : i32
    %c0_i32_1 = arith.constant 0 : i32
    return %c0_i32, %c0_i32_0 : i32, i32
  }
  func.func @transform_9(%arg0: i32) -> (i32, i32) {
    %c0_i32 = arith.constant 0 : i32
    %c0_i32_0 = arith.constant 0 : i32
    return %arg0, %c0_i32 : i32, i32
  }
}

</mosaic_0001>

<llo_original>
// kernel: tpu_custom_call.1
$region0: #{tpu_custom_call.1}
  #allocation0 [shape = 'u32[]', space=smem, size = 0x4, offset = 0x4, fixed_abs, tag = 'smem constant byte address 0x4 - core index']
  #allocation1 [shape = 'u32[144,128]{1,0:T(1,128)}', space=vmem, size = 0x12000, scoped, tag = 'internal scratch']
  %s0 = inlined_call_operand.hbm [shape: f32[8,256], index: 0, kind: input, shape index: {}]
  %s1 = inlined_call_operand.hbm [shape: bf16[256,128], index: 1, kind: input, shape index: {}]
  %s2 = inlined_call_operand.vmem [shape: f32[1,128], index: 2, kind: input, shape index: {}]
  %s3 = inlined_call_operand.hbm [shape: bf16[128,128], index: 3, kind: input, shape index: {}]
  %s4 = inlined_call_operand.vmem [shape: f32[1,128], index: 4, kind: input, shape index: {}]
  %s5 = inlined_call_operand.hbm [shape: bf16[128,128], index: 5, kind: input, shape index: {}]
  %s6 = inlined_call_operand.vmem [shape: f32[1,128], index: 6, kind: input, shape index: {}]
  %s7 = inlined_call_operand.hbm [shape: bf16[128,256], index: 7, kind: input, shape index: {}]
  %s8 = inlined_call_operand.vmem [shape: f32[1,256], index: 8, kind: input, shape index: {}]
  %s9 = inlined_call_operand.hbm [shape: bf16[8,256], index: 9, kind: output, shape index: {}]
  %s10 = sld [smem:[#allocation0]]
  $region66: #{tpu_custom_call.1} parent=0
    _
  %s12 = ssub.s32 1, %s10
  %s13 = scalar_select 0, %s12, %s10
  $region1: #{tpu_custom_call.1} parent=0
    #allocation2 [shape = 'u8[8192]{0}', space=vmem, size = 0x2000, scoped, tag = 'input window, operand 0, single buffered']
    #allocation3 [shape = 's32[1]{0}', space=sflag, size = 0x4, scoped, tag = 'scoped memory for tpu_custom_call.1']
    #allocation4 [shape = 's32[1]{0}', space=sflag, size = 0x4, scoped, tag = 'scoped memory for tpu_custom_call.1']
    #allocation5 [shape = 'u8[65536]{0}', space=vmem, size = 0x10000, scoped, tag = 'input window, operand 1, single buffered']
    #allocation6 [shape = 's32[1]{0}', space=sflag, size = 0x4, scoped, tag = 'scoped memory for tpu_custom_call.1']
    #allocation7 [shape = 'u8[32768]{0}', space=vmem, size = 0x8000, scoped, tag = 'input window, operand 3, single buffered']
    #allocation8 [shape = 'u8[32768]{0}', space=vmem, size = 0x8000, scoped, tag = 'input window, operand 5, single buffered']
    #allocation9 [shape = 's32[1]{0}', space=sflag, size = 0x4, scoped, tag = 'scoped memory for tpu_custom_call.1']
    #allocation10 [shape = 'u8[65536]{0}', space=vmem, size = 0x10000, scoped, tag = 'input window, operand 7, single buffered']
    #allocation11 [shape = 'u8[4096]{0}', space=vmem, size = 0x1000, scoped, tag = 'output window, operand 0, single buffered']
    %14 = vsyncpa [#allocation3], 0
    %15 = vsyncpa [#allocation6], 0
    %16 = vsyncpa [#allocation9], 0
    %17 = vsyncpa [#allocation4], 0
    // Predicated region
    $region2: #{tpu_custom_call.1} parent=1 // pred_check
      _
    $region3: #{tpu_custom_call.1} parent=1 // pred_check_branch
      %19 = sbr.rel (0) target = $region5
    $region4: #{tpu_custom_call.1} parent=1 // pred_region
      %s21 = ssub.s32 256, 256
      %22 = vsyncadd [#allocation3], %s21
      %s24 = sshll.u32 [#allocation2], 4
      %s25 = int_to_ptr.vmem [resolvable:$true] %s24
      %27 = dma.hbm_to_vmem [thread:$0]  %s0, 256, %s25, [#allocation3]
    $region5: #{tpu_custom_call.1} parent=1 // pred_fallthru
      _
    // Predicated region
    $region6: #{tpu_custom_call.1} parent=1 // pred_check
      _
    $region7: #{tpu_custom_call.1} parent=1 // pred_check_branch
      %29 = sbr.rel (0) target = $region9
    $region8: #{tpu_custom_call.1} parent=1 // pred_region
      %s31 = ssub.s32 2048, 2048
      %32 = vsyncadd [#allocation6], %s31
      %s33 = sshll.u32 [#allocation5], 4
      %s34 = int_to_ptr.vmem [resolvable:$true] %s33
      %39 = dma.hbm_to_vmem [thread:$0]  %s1, 2048, %s34, [#allocation6], 64, 64, 4
    $region9: #{tpu_custom_call.1} parent=1 // pred_fallthru
      _
    // Predicated region
    $region10: #{tpu_custom_call.1} parent=1 // pred_check
      _
    $region11: #{tpu_custom_call.1} parent=1 // pred_check_branch
      %41 = sbr.rel (0) target = $region13
    $region12: #{tpu_custom_call.1} parent=1 // pred_region
      _
    $region13: #{tpu_custom_call.1} parent=1 // pred_fallthru
      _
    // Predicated region
    $region14: #{tpu_custom_call.1} parent=1 // pred_check
      _
    $region15: #{tpu_custom_call.1} parent=1 // pred_check_branch
      %43 = sbr.rel (0) target = $region17
    $region16: #{tpu_custom_call.1} parent=1 // pred_region
      %s45 = ssub.s32 1024, 1024
      %46 = vsyncadd [#allocation6], %s45
      %s47 = sshll.u32 [#allocation7], 4
      %s48 = int_to_ptr.vmem [resolvable:$true] %s47
      %53 = dma.hbm_to_vmem [thread:$0]  %s3, 1024, %s48, [#allocation6], 64, 64, 4
    $region17: #{tpu_custom_call.1} parent=1 // pred_fallthru
      _
    // Predicated region
    $region18: #{tpu_custom_call.1} parent=1 // pred_check
      _
    $region19: #{tpu_custom_call.1} parent=1 // pred_check_branch
      %55 = sbr.rel (0) target = $region21
    $region20: #{tpu_custom_call.1} parent=1 // pred_region
      _
    $region21: #{tpu_custom_call.1} parent=1 // pred_fallthru
      _
    // Predicated region
    $region22: #{tpu_custom_call.1} parent=1 // pred_check
      _
    $region23: #{tpu_custom_call.1} parent=1 // pred_check_branch
      %57 = sbr.rel (0) target = $region25
    $region24: #{tpu_custom_call.1} parent=1 // pred_region
      %s59 = ssub.s32 1024, 1024
      %60 = vsyncadd [#allocation9], %s59
      %s61 = sshll.u32 [#allocation8], 4
      %s62 = int_to_ptr.vmem [resolvable:$true] %s61
      %67 = dma.hbm_to_vmem [thread:$0]  %s5, 1024, %s62, [#allocation9], 64, 64, 4
    $region25: #{tpu_custom_call.1} parent=1 // pred_fallthru
      _
    // Predicated region
    $region26: #{tpu_custom_call.1} parent=1 // pred_check
      _
    $region27: #{tpu_custom_call.1} parent=1 // pred_check_branch
      %69 = sbr.rel (0) target = $region29
    $region28: #{tpu_custom_call.1} parent=1 // pred_region
      _
    $region29: #{tpu_custom_call.1} parent=1 // pred_fallthru
      _
    // Predicated region
    $region30: #{tpu_custom_call.1} parent=1 // pred_check
      _
    $region31: #{tpu_custom_call.1} parent=1 // pred_check_branch
      %71 = sbr.rel (0) target = $region33
    $region32: #{tpu_custom_call.1} parent=1 // pred_region
      %s73 = ssub.s32 2048, 2048
      %74 = vsyncadd [#allocation9], %s73
      %s75 = sshll.u32 [#allocation10], 4
      %s76 = int_to_ptr.vmem [resolvable:$true] %s75
      %81 = dma.hbm_to_vmem [thread:$0]  %s7, 2048, %s76, [#allocation9], 128, 128, 8
    $region33: #{tpu_custom_call.1} parent=1 // pred_fallthru
      _
    // Predicated region
    $region34: #{tpu_custom_call.1} parent=1 // pred_check
      _
    $region35: #{tpu_custom_call.1} parent=1 // pred_check_branch
      %83 = sbr.rel (0) target = $region37
    $region36: #{tpu_custom_call.1} parent=1 // pred_region
      _
    $region37: #{tpu_custom_call.1} parent=1 // pred_fallthru
      _
    // Predicated region
    $region38: #{tpu_custom_call.1} parent=1 // pred_check
      _
    $region39: #{tpu_custom_call.1} parent=1 // pred_check_branch
      %85 = sbr.rel (0) target = $region41
    $region40: #{tpu_custom_call.1} parent=1 // pred_region
      %86 = dma.done [#allocation3], 256
    $region41: #{tpu_custom_call.1} parent=1 // pred_fallthru
      _
    // Predicated region
    $region42: #{tpu_custom_call.1} parent=1 // pred_check
      _
    $region43: #{tpu_custom_call.1} parent=1 // pred_check_branch
      %88 = sbr.rel (0) target = $region45
    $region44: #{tpu_custom_call.1} parent=1 // pred_region
      %89 = dma.done [#allocation6], 2048
    $region45: #{tpu_custom_call.1} parent=1 // pred_fallthru
      _
    // Predicated region
    $region46: #{tpu_custom_call.1} parent=1 // pred_check
      _
    $region47: #{tpu_custom_call.1} parent=1 // pred_check_branch
      %91 = sbr.rel (0) target = $region49
    $region48: #{tpu_custom_call.1} parent=1 // pred_region
      %92 = dma.done [#allocation6], 1024
    $region49: #{tpu_custom_call.1} parent=1 // pred_fallthru
      _
    // Predicated region
    $region50: #{tpu_custom_call.1} parent=1 // pred_check
      _
    $region51: #{tpu_custom_call.1} parent=1 // pred_check_branch
      %94 = sbr.rel (0) target = $region53
    $region52: #{tpu_custom_call.1} parent=1 // pred_region
      %95 = dma.done [#allocation9], 1024
    $region53: #{tpu_custom_call.1} parent=1 // pred_fallthru
      _
    // Predicated region
    $region54: #{tpu_custom_call.1} parent=1 // pred_check
      _
    $region55: #{tpu_custom_call.1} parent=1 // pred_check_branch
      %97 = sbr.rel (0) target = $region57
    $region56: #{tpu_custom_call.1} parent=1 // pred_region
      %98 = dma.done [#allocation9], 2048
    $region57: #{tpu_custom_call.1} parent=1 // pred_fallthru
      _
    %v100 = vld [vmem:[#allocation2] sm:$0xff]
    %v101 = vld [vmem:[#allocation2 + $0x8] sm:$0xff]
    %v102 = vpack.c.bf16 %v100, %v100
    %v103 = vpack.c.bf16 %v101, %v101
    %v104 = vld [vmem:[#allocation5] sm:$0xf]
    %v105 = vld [vmem:[#allocation5 + $0x4] sm:$0xf]
    %v106 = vld [vmem:[#allocation5 + $0x8] sm:$0xf]
    %v107 = vld [vmem:[#allocation5 + $0xc] sm:$0xf]
    %v108 = vld [vmem:[#allocation5 + $0x10] sm:$0xf]
    %v109 = vld [vmem:[#allocation5 + $0x14] sm:$0xf]
    %v110 = vld [vmem:[#allocation5 + $0x18] sm:$0xf]
    %v111 = vld [vmem:[#allocation5 + $0x1c] sm:$0xf]
    %v112 = vld [vmem:[#allocation5 + $0x20] sm:$0xf]
    %v113 = vld [vmem:[#allocation5 + $0x24] sm:$0xf]
    %v114 = vld [vmem:[#allocation5 + $0x28] sm:$0xf]
    %v115 = vld [vmem:[#allocation5 + $0x2c] sm:$0xf]
    %v116 = vld [vmem:[#allocation5 + $0x30] sm:$0xf]
    %v117 = vld [vmem:[#allocation5 + $0x34] sm:$0xf]
    %v118 = vld [vmem:[#allocation5 + $0x38] sm:$0xf]
    %v119 = vld [vmem:[#allocation5 + $0x3c] sm:$0xf]
    %v120 = vld [vmem:[#allocation5 + $0x40] sm:$0xf]
    %v121 = vld [vmem:[#allocation5 + $0x44] sm:$0xf]
    %v122 = vld [vmem:[#allocation5 + $0x48] sm:$0xf]
    %v123 = vld [vmem:[#allocation5 + $0x4c] sm:$0xf]
    %v124 = vld [vmem:[#allocation5 + $0x50] sm:$0xf]
    %v125 = vld [vmem:[#allocation5 + $0x54] sm:$0xf]
    %v126 = vld [vmem:[#allocation5 + $0x58] sm:$0xf]
    %v127 = vld [vmem:[#allocation5 + $0x5c] sm:$0xf]
    %v128 = vld [vmem:[#allocation5 + $0x60] sm:$0xf]
    %v129 = vld [vmem:[#allocation5 + $0x64] sm:$0xf]
    %v130 = vld [vmem:[#allocation5 + $0x68] sm:$0xf]
    %v131 = vld [vmem:[#allocation5 + $0x6c] sm:$0xf]
    %v132 = vld [vmem:[#allocation5 + $0x70] sm:$0xf]
    %v133 = vld [vmem:[#allocation5 + $0x74] sm:$0xf]
    %v134 = vld [vmem:[#allocation5 + $0x78] sm:$0xf]
    %v135 = vld [vmem:[#allocation5 + $0x7c] sm:$0xf]
    %v136 = vld [vmem:[%s2] sm:$0x1]
    %v138 = vlaneseq
    %v139 = vshrl.u32 %v138, 7
    %v140 = vsub.s32 0, %v139
    %v141 = vrot.slane %v136, %v140
    %v175 = vunpack.c.l.b16 %v104
    %v176 = vunpack.c.l.b16 %v105
    %v177 = vunpack.c.l.b16 %v106
    %v178 = vunpack.c.l.b16 %v107
    %v179 = vunpack.c.l.b16 %v108
    %v180 = vunpack.c.l.b16 %v109
    %v181 = vunpack.c.l.b16 %v110
    %v182 = vunpack.c.l.b16 %v111
    %v183 = vunpack.c.l.b16 %v112
    %v184 = vunpack.c.l.b16 %v113
    %v185 = vunpack.c.l.b16 %v114
    %v186 = vunpack.c.l.b16 %v115
    %v187 = vunpack.c.l.b16 %v116
    %v188 = vunpack.c.l.b16 %v117
    %v189 = vunpack.c.l.b16 %v118
    %v190 = vunpack.c.l.b16 %v119
    %v191 = vunpack.c.l.b16 %v120
    %v192 = vunpack.c.l.b16 %v121
    %v193 = vunpack.c.l.b16 %v122
    %v194 = vunpack.c.l.b16 %v123
    %v195 = vunpack.c.l.b16 %v124
    %v196 = vunpack.c.l.b16 %v125
    %v197 = vunpack.c.l.b16 %v126
    %v198 = vunpack.c.l.b16 %v127
    %v199 = vunpack.c.l.b16 %v128
    %v200 = vunpack.c.l.b16 %v129
    %v201 = vunpack.c.l.b16 %v130
    %v202 = vunpack.c.l.b16 %v131
    %v203 = vunpack.c.l.b16 %v132
    %v204 = vunpack.c.l.b16 %v133
    %v205 = vunpack.c.l.b16 %v134
    %v206 = vunpack.c.l.b16 %v135
    %v207 = vpack.c.b16 %v176, %v175
    %v208 = vpack.c.b16 %v178, %v177
    %v209 = vpack.c.b16 %v180, %v179
    %v210 = vpack.c.b16 %v182, %v181
    %v211 = vpack.c.b16 %v184, %v183
    %v212 = vpack.c.b16 %v186, %v185
    %v213 = vpack.c.b16 %v188, %v187
    %v214 = vpack.c.b16 %v190, %v189
    %v215 = vpack.c.b16 %v192, %v191
    %v216 = vpack.c.b16 %v194, %v193
    %v217 = vpack.c.b16 %v196, %v195
    %v218 = vpack.c.b16 %v198, %v197
    %v219 = vpack.c.b16 %v200, %v199
    %v220 = vpack.c.b16 %v202, %v201
    %v221 = vpack.c.b16 %v204, %v203
    %v222 = vpack.c.b16 %v206, %v205
    %239 = vmatprep.subr.bf16.mxu0 0
    %240 = vmatpush1.bf16.msra.mxu0 %v214
    %241 = vmatprep.subr.bf16.mxu0 0
    %242 = vmatpush1.bf16.msra.mxu0 %v213
    %243 = vmatprep.subr.bf16.mxu0 0
    %244 = vmatpush1.bf16.msra.mxu0 %v212
    %245 = vmatprep.subr.bf16.mxu0 0
    %246 = vmatpush1.bf16.msra.mxu0 %v211
    %247 = vmatprep.subr.bf16.mxu0 0
    %248 = vmatpush1.bf16.msra.mxu0 %v210
    %249 = vmatprep.subr.bf16.mxu0 0
    %250 = vmatpush1.bf16.msra.mxu0 %v209
    %251 = vmatprep.subr.bf16.mxu0 0
    %252 = vmatpush1.bf16.msra.mxu0 %v208
    %253 = vmatprep.subr.bf16.mxu0 0
    %254 = vmatpush1.bf16.msra.mxu0 %v207
    %255 = vmatprep.subr.bf16.mxu0 0
    %256 = vmatpush2.bf16.msra.mxu0 %v222
    %257 = vmatprep.subr.bf16.mxu0 0
    %258 = vmatpush2.bf16.msra.mxu0 %v221
    %259 = vmatprep.subr.bf16.mxu0 0
    %260 = vmatpush2.bf16.msra.mxu0 %v220
    %261 = vmatprep.subr.bf16.mxu0 0
    %262 = vmatpush2.bf16.msra.mxu0 %v219
    %263 = vmatprep.subr.bf16.mxu0 0
    %264 = vmatpush2.bf16.msra.mxu0 %v218
    %265 = vmatprep.subr.bf16.mxu0 0
    %266 = vmatpush2.bf16.msra.mxu0 %v217
    %267 = vmatprep.subr.bf16.mxu0 0
    %268 = vmatpush2.bf16.msra.mxu0 %v216
    %269 = vmatprep.subr.bf16.mxu0 0
    %270 = vmatpush2.bf16.msra.mxu0 %v215
    %271 = vmatprep.mubr.bf16.mxu0 %v103
    %272 = vmatmul.mubr.bf16.gmra.mxu0 %v102
    %v273 = vpop.f32.mrf.mxu0
    %v274 = vadd.f32 %v141, %v273
    %v275 = vpop.f32.mrf.mxu0
    %v276 = vpop.f32.mrf.mxu0
    %v277 = vpop.f32.mrf.mxu0
    %278 = vdwg.mxu0
    %v279 = vmax.f32 %v274, 0.0
    %v280 = vpack.c.bf16 %v279, %v279
    %v281 = vld [vmem:[#allocation7] sm:$0xf]
    %v282 = vld [vmem:[#allocation7 + $0x4] sm:$0xf]
    %v283 = vld [vmem:[#allocation7 + $0x8] sm:$0xf]
    %v284 = vld [vmem:[#allocation7 + $0xc] sm:$0xf]
    %v285 = vld [vmem:[#allocation7 + $0x10] sm:$0xf]
    %v286 = vld [vmem:[#allocation7 + $0x14] sm:$0xf]
    %v287 = vld [vmem:[#allocation7 + $0x18] sm:$0xf]
    %v288 = vld [vmem:[#allocation7 + $0x1c] sm:$0xf]
    %v289 = vld [vmem:[#allocation7 + $0x20] sm:$0xf]
    %v290 = vld [vmem:[#allocation7 + $0x24] sm:$0xf]
    %v291 = vld [vmem:[#allocation7 + $0x28] sm:$0xf]
    %v292 = vld [vmem:[#allocation7 + $0x2c] sm:$0xf]
    %v293 = vld [vmem:[#allocation7 + $0x30] sm:$0xf]
    %v294 = vld [vmem:[#allocation7 + $0x34] sm:$0xf]
    %v295 = vld [vmem:[#allocation7 + $0x38] sm:$0xf]
    %v296 = vld [vmem:[#allocation7 + $0x3c] sm:$0xf]
    %v297 = vld [vmem:[%s4] sm:$0x1]
    %v299 = vlaneseq
    %v300 = vshrl.u32 %v299, 7
    %v301 = vsub.s32 0, %v300
    %v302 = vrot.slane %v297, %v301
    %v320 = vunpack.c.l.b16 %v281
    %v321 = vunpack.c.l.b16 %v282
    %v322 = vunpack.c.l.b16 %v283
    %v323 = vunpack.c.l.b16 %v284
    %v324 = vunpack.c.l.b16 %v285
    %v325 = vunpack.c.l.b16 %v286
    %v326 = vunpack.c.l.b16 %v287
    %v327 = vunpack.c.l.b16 %v288
    %v328 = vunpack.c.l.b16 %v289
    %v329 = vunpack.c.l.b16 %v290
    %v330 = vunpack.c.l.b16 %v291
    %v331 = vunpack.c.l.b16 %v292
    %v332 = vunpack.c.l.b16 %v293
    %v333 = vunpack.c.l.b16 %v294
    %v334 = vunpack.c.l.b16 %v295
    %v335 = vunpack.c.l.b16 %v296
    %v336 = vpack.c.b16 %v321, %v320
    %v337 = vpack.c.b16 %v323, %v322
    %v338 = vpack.c.b16 %v325, %v324
    %v339 = vpack.c.b16 %v327, %v326
    %v340 = vpack.c.b16 %v329, %v328
    %v341 = vpack.c.b16 %v331, %v330
    %v342 = vpack.c.b16 %v333, %v332
    %v343 = vpack.c.b16 %v335, %v334
    %352 = vmatprep.subr.bf16.mxu0 0
    %353 = vmatpush1.bf16.msra.mxu0 %v343
    %354 = vmatprep.subr.bf16.mxu0 0
    %355 = vmatpush1.bf16.msra.mxu0 %v342
    %356 = vmatprep.subr.bf16.mxu0 0
    %357 = vmatpush1.bf16.msra.mxu0 %v341
    %358 = vmatprep.subr.bf16.mxu0 0
    %359 = vmatpush1.bf16.msra.mxu0 %v340
    %360 = vmatprep.subr.bf16.mxu0 0
    %361 = vmatpush1.bf16.msra.mxu0 %v339
    %362 = vmatprep.subr.bf16.mxu0 0
    %363 = vmatpush1.bf16.msra.mxu0 %v338
    %364 = vmatprep.subr.bf16.mxu0 0
    %365 = vmatpush1.bf16.msra.mxu0 %v337
    %366 = vmatprep.subr.bf16.mxu0 0
    %367 = vmatpush1.bf16.msra.mxu0 %v336
    %368 = vmatprep.subr.bf16.mxu0 0
    %369 = vmatpush2.bf16.msra.mxu0 0
    %370 = vmatprep.subr.bf16.mxu0 0
    %371 = vmatpush2.bf16.msra.mxu0 0
    %372 = vmatprep.subr.bf16.mxu0 0
    %373 = vmatpush2.bf16.msra.mxu0 0
    %374 = vmatprep.subr.bf16.mxu0 0
    %375 = vmatpush2.bf16.msra.mxu0 0
    %376 = vmatprep.subr.bf16.mxu0 0
    %377 = vmatpush2.bf16.msra.mxu0 0
    %378 = vmatprep.subr.bf16.mxu0 0
    %379 = vmatpush2.bf16.msra.mxu0 0
    %380 = vmatprep.subr.bf16.mxu0 0
    %381 = vmatpush2.bf16.msra.mxu0 0
    %382 = vmatprep.subr.bf16.mxu0 0
    %383 = vmatpush2.bf16.msra.mxu0 0
    %384 = vmatprep.mubr.bf16.mxu0 0
    %385 = vmatmul.mubr.bf16.gmra.mxu0 %v280
    %v386 = vpop.f32.mrf.mxu0
    %v387 = vadd.f32 %v302, %v386
    %v388 = vpop.f32.mrf.mxu0
    %v389 = vpop.f32.mrf.mxu0
    %v390 = vpop.f32.mrf.mxu0
    %391 = vdwg.mxu0
    %v392 = vmax.f32 %v387, 0.0
    %v393 = vpack.c.bf16 %v392, %v392
    %v394 = vld [vmem:[#allocation8] sm:$0xf]
    %v395 = vld [vmem:[#allocation8 + $0x4] sm:$0xf]
    %v396 = vld [vmem:[#allocation8 + $0x8] sm:$0xf]
    %v397 = vld [vmem:[#allocation8 + $0xc] sm:$0xf]
    %v398 = vld [vmem:[#allocation8 + $0x10] sm:$0xf]
    %v399 = vld [vmem:[#allocation8 + $0x14] sm:$0xf]
    %v400 = vld [vmem:[#allocation8 + $0x18] sm:$0xf]
    %v401 = vld [vmem:[#allocation8 + $0x1c] sm:$0xf]
    %v402 = vld [vmem:[#allocation8 + $0x20] sm:$0xf]
    %v403 = vld [vmem:[#allocation8 + $0x24] sm:$0xf]
    %v404 = vld [vmem:[#allocation8 + $0x28] sm:$0xf]
    %v405 = vld [vmem:[#allocation8 + $0x2c] sm:$0xf]
    %v406 = vld [vmem:[#allocation8 + $0x30] sm:$0xf]
    %v407 = vld [vmem:[#allocation8 + $0x34] sm:$0xf]
    %v408 = vld [vmem:[#allocation8 + $0x38] sm:$0xf]
    %v409 = vld [vmem:[#allocation8 + $0x3c] sm:$0xf]
    %v410 = vld [vmem:[%s6] sm:$0x1]
    %v412 = vlaneseq
    %v413 = vshrl.u32 %v412, 7
    %v414 = vsub.s32 0, %v413
    %v415 = vrot.slane %v410, %v414
    %v433 = vunpack.c.l.b16 %v394
    %v434 = vunpack.c.l.b16 %v395
    %v435 = vunpack.c.l.b16 %v396
    %v436 = vunpack.c.l.b16 %v397
    %v437 = vunpack.c.l.b16 %v398
    %v438 = vunpack.c.l.b16 %v399
    %v439 = vunpack.c.l.b16 %v400
    %v440 = vunpack.c.l.b16 %v401
    %v441 = vunpack.c.l.b16 %v402
    %v442 = vunpack.c.l.b16 %v403
    %v443 = vunpack.c.l.b16 %v404
    %v444 = vunpack.c.l.b16 %v405
    %v445 = vunpack.c.l.b16 %v406
    %v446 = vunpack.c.l.b16 %v407
    %v447 = vunpack.c.l.b16 %v408
    %v448 = vunpack.c.l.b16 %v409
    %v449 = vpack.c.b16 %v434, %v433
    %v450 = vpack.c.b16 %v436, %v435
    %v451 = vpack.c.b16 %v438, %v437
    %v452 = vpack.c.b16 %v440, %v439
    %v453 = vpack.c.b16 %v442, %v441
    %v454 = vpack.c.b16 %v444, %v443
    %v455 = vpack.c.b16 %v446, %v445
    %v456 = vpack.c.b16 %v448, %v447
    %465 = vmatprep.subr.bf16.mxu0 0
    %466 = vmatpush1.bf16.msra.mxu0 %v456
    %467 = vmatprep.subr.bf16.mxu0 0
    %468 = vmatpush1.bf16.msra.mxu0 %v455
    %469 = vmatprep.subr.bf16.mxu0 0
    %470 = vmatpush1.bf16.msra.mxu0 %v454
    %471 = vmatprep.subr.bf16.mxu0 0
    %472 = vmatpush1.bf16.msra.mxu0 %v453
    %473 = vmatprep.subr.bf16.mxu0 0
    %474 = vmatpush1.bf16.msra.mxu0 %v452
    %475 = vmatprep.subr.bf16.mxu0 0
    %476 = vmatpush1.bf16.msra.mxu0 %v451
    %477 = vmatprep.subr.bf16.mxu0 0
    %478 = vmatpush1.bf16.msra.mxu0 %v450
    %479 = vmatprep.subr.bf16.mxu0 0
    %480 = vmatpush1.bf16.msra.mxu0 %v449
    %481 = vmatprep.subr.bf16.mxu0 0
    %482 = vmatpush2.bf16.msra.mxu0 0
    %483 = vmatprep.subr.bf16.mxu0 0
    %484 = vmatpush2.bf16.msra.mxu0 0
    %485 = vmatprep.subr.bf16.mxu0 0
    %486 = vmatpush2.bf16.msra.mxu0 0
    %487 = vmatprep.subr.bf16.mxu0 0
    %488 = vmatpush2.bf16.msra.mxu0 0
    %489 = vmatprep.subr.bf16.mxu0 0
    %490 = vmatpush2.bf16.msra.mxu0 0
    %491 = vmatprep.subr.bf16.mxu0 0
    %492 = vmatpush2.bf16.msra.mxu0 0
    %493 = vmatprep.subr.bf16.mxu0 0
    %494 = vmatpush2.bf16.msra.mxu0 0
    %495 = vmatprep.subr.bf16.mxu0 0
    %496 = vmatpush2.bf16.msra.mxu0 0
    %497 = vmatprep.mubr.bf16.mxu0 0
    %498 = vmatmul.mubr.bf16.gmra.mxu0 %v393
    %v499 = vpop.f32.mrf.mxu0
    %v500 = vadd.f32 %v415, %v499
    %v501 = vpop.f32.mrf.mxu0
    %v502 = vpop.f32.mrf.mxu0
    %v503 = vpop.f32.mrf.mxu0
    %504 = vdwg.mxu0
    %v505 = vmax.f32 %v500, 0.0
    %v506 = vpack.c.bf16 %v505, %v505
    %v507 = vld [vmem:[#allocation10] sm:$0xff]
    %v508 = vld [vmem:[#allocation10 + $0x8] sm:$0xff]
    %v509 = vld [vmem:[#allocation10 + $0x10] sm:$0xff]
    %v510 = vld [vmem:[#allocation10 + $0x18] sm:$0xff]
    %v511 = vld [vmem:[#allocation10 + $0x20] sm:$0xff]
    %v512 = vld [vmem:[#allocation10 + $0x28] sm:$0xff]
    %v513 = vld [vmem:[#allocation10 + $0x30] sm:$0xff]
    %v514 = vld [vmem:[#allocation10 + $0x38] sm:$0xff]
    %v515 = vld [vmem:[#allocation10 + $0x40] sm:$0xff]
    %v516 = vld [vmem:[#allocation10 + $0x48] sm:$0xff]
    %v517 = vld [vmem:[#allocation10 + $0x50] sm:$0xff]
    %v518 = vld [vmem:[#allocation10 + $0x58] sm:$0xff]
    %v519 = vld [vmem:[#allocation10 + $0x60] sm:$0xff]
    %v520 = vld [vmem:[#allocation10 + $0x68] sm:$0xff]
    %v521 = vld [vmem:[#allocation10 + $0x70] sm:$0xff]
    %v522 = vld [vmem:[#allocation10 + $0x78] sm:$0xff]
    %v523 = vld [vmem:[%s8] sm:$0x3]
    %v525 = vlaneseq
    %v526 = vshrl.u32 %v525, 7
    %v527 = vsub.s32 0, %v526
    %v528 = vrot.slane %v523, %v527
    %v529 = vlaneseq
    %v530 = vshrl.u32 %v529, 7
    %v531 = vsub.s32 1, %v530
    %v532 = vrot.slane %v523, %v531
    %v551 = vunpack.c.l.b16 %v507
    %v552 = vunpack.c.h.b16 %v507
    %v553 = vunpack.c.l.b16 %v508
    %v554 = vunpack.c.h.b16 %v508
    %v555 = vunpack.c.l.b16 %v509
    %v556 = vunpack.c.h.b16 %v509
    %v557 = vunpack.c.l.b16 %v510
    %v558 = vunpack.c.h.b16 %v510
    %v559 = vunpack.c.l.b16 %v511
    %v560 = vunpack.c.h.b16 %v511
    %v561 = vunpack.c.l.b16 %v512
    %v562 = vunpack.c.h.b16 %v512
    %v563 = vunpack.c.l.b16 %v513
    %v564 = vunpack.c.h.b16 %v513
    %v565 = vunpack.c.l.b16 %v514
    %v566 = vunpack.c.h.b16 %v514
    %v567 = vunpack.c.l.b16 %v515
    %v568 = vunpack.c.h.b16 %v515
    %v569 = vunpack.c.l.b16 %v516
    %v570 = vunpack.c.h.b16 %v516
    %v571 = vunpack.c.l.b16 %v517
    %v572 = vunpack.c.h.b16 %v517
    %v573 = vunpack.c.l.b16 %v518
    %v574 = vunpack.c.h.b16 %v518
    %v575 = vunpack.c.l.b16 %v519
    %v576 = vunpack.c.h.b16 %v519
    %v577 = vunpack.c.l.b16 %v520
    %v578 = vunpack.c.h.b16 %v520
    %v579 = vunpack.c.l.b16 %v521
    %v580 = vunpack.c.h.b16 %v521
    %v581 = vunpack.c.l.b16 %v522
    %v582 = vunpack.c.h.b16 %v522
    %v583 = vpack.c.b16 %v553, %v551
    %v584 = vpack.c.b16 %v554, %v552
    %v585 = vpack.c.b16 %v557, %v555
    %v586 = vpack.c.b16 %v558, %v556
    %v587 = vpack.c.b16 %v561, %v559
    %v588 = vpack.c.b16 %v562, %v560
    %v589 = vpack.c.b16 %v565, %v563
    %v590 = vpack.c.b16 %v566, %v564
    %v591 = vpack.c.b16 %v569, %v567
    %v592 = vpack.c.b16 %v570, %v568
    %v593 = vpack.c.b16 %v573, %v571
    %v594 = vpack.c.b16 %v574, %v572
    %v595 = vpack.c.b16 %v577, %v575
    %v596 = vpack.c.b16 %v578, %v576
    %v597 = vpack.c.b16 %v581, %v579
    %v598 = vpack.c.b16 %v582, %v580
    %615 = vmatprep.subr.bf16.mxu0 %v598
    %616 = vmatpush1.bf16.msra.mxu0 %v597
    %617 = vmatprep.subr.bf16.mxu0 %v596
    %618 = vmatpush1.bf16.msra.mxu0 %v595
    %619 = vmatprep.subr.bf16.mxu0 %v594
    %620 = vmatpush1.bf16.msra.mxu0 %v593
    %621 = vmatprep.subr.bf16.mxu0 %v592
    %622 = vmatpush1.bf16.msra.mxu0 %v591
    %623 = vmatprep.subr.bf16.mxu0 %v590
    %624 = vmatpush1.bf16.msra.mxu0 %v589
    %625 = vmatprep.subr.bf16.mxu0 %v588
    %626 = vmatpush1.bf16.msra.mxu0 %v587
    %627 = vmatprep.subr.bf16.mxu0 %v586
    %628 = vmatpush1.bf16.msra.mxu0 %v585
    %629 = vmatprep.subr.bf16.mxu0 %v584
    %630 = vmatpush1.bf16.msra.mxu0 %v583
    %631 = vmatprep.subr.bf16.mxu0 0
    %632 = vmatpush2.bf16.msra.mxu0 0
    %633 = vmatprep.subr.bf16.mxu0 0
    %634 = vmatpush2.bf16.msra.mxu0 0
    %635 = vmatprep.subr.bf16.mxu0 0
    %636 = vmatpush2.bf16.msra.mxu0 0
    %637 = vmatprep.subr.bf16.mxu0 0
    %638 = vmatpush2.bf16.msra.mxu0 0
    %639 = vmatprep.subr.bf16.mxu0 0
    %640 = vmatpush2.bf16.msra.mxu0 0
    %641 = vmatprep.subr.bf16.mxu0 0
    %642 = vmatpush2.bf16.msra.mxu0 0
    %643 = vmatprep.subr.bf16.mxu0 0
    %644 = vmatpush2.bf16.msra.mxu0 0
    %645 = vmatprep.subr.bf16.mxu0 0
    %646 = vmatpush2.bf16.msra.mxu0 0
    %647 = vmatprep.mubr.bf16.mxu0 0
    %648 = vmatmul.mubr.bf16.gmra.mxu0 %v506
    %v649 = vpop.f32.mrf.mxu0
    %v650 = vadd.f32 %v528, %v649
    %v651 = vpop.f32.mrf.mxu0
    %v652 = vadd.f32 %v532, %v651
    %v653 = vpop.f32.mrf.mxu0
    %v654 = vpop.f32.mrf.mxu0
    %655 = vdwg.mxu0
    %v656 = vmax.f32 %v650, 0.0
    %v657 = vmax.f32 %v652, 0.0
    %v658 = vpack.c.bf16 %v656, %v656
    %v659 = vpack.c.bf16 %v657, %v657
    %v662 = vunpack.c.l.b16 %v658
    %v663 = vunpack.c.l.b16 %v659
    %v664 = vpack.c.b16 %v663, %v662
    %666 = vst [vmem:[#allocation11] sm:$0xff] %v664
    // Predicated region
    $region58: #{tpu_custom_call.1} parent=1 // pred_check
      _
    $region59: #{tpu_custom_call.1} parent=1 // pred_check_branch
      %668 = sbr.rel (0) target = $region61
    $region60: #{tpu_custom_call.1} parent=1 // pred_region
      %s670 = ssub.s32 128, 128
      %671 = vsyncadd [#allocation4], %s670
      %s673 = sshll.u32 [#allocation11], 4
      %s674 = int_to_ptr.vmem [resolvable:$true] %s673
      %676 = dma.vmem_to_hbm [thread:$0]  %s674, 128, %s9, [#allocation4]
    $region61: #{tpu_custom_call.1} parent=1 // pred_fallthru
      _
    // Predicated region
    $region62: #{tpu_custom_call.1} parent=1 // pred_check
      _
    $region63: #{tpu_custom_call.1} parent=1 // pred_check_branch
      %678 = sbr.rel (0) target = $region65
    $region64: #{tpu_custom_call.1} parent=1 // pred_region
      %679 = dma.done [#allocation4], 128
    $region65: #{tpu_custom_call.1} parent=1 // pred_fallthru
      _
    %680 = vsyncpa [#allocation3], 1
    %681 = vsyncpa [#allocation6], 1
    %682 = vsyncpa [#allocation9], 1
    %683 = vsyncpa [#allocation4], 1

</llo_original>
